<compile_context>
chip_gen: v6e
topology: v6e:2x2x1
jax: 0.10.0
libtpu: 0.0.40
codegen_flags: <defaults>
</compile_context>

<pallas_src>
import functools

import jax
import jax.numpy as jnp
from jax.experimental import pallas as pl
from jax.experimental.pallas import tpu as pltpu


def _swish_kernel(x_ref, a_ref, o_ref):
    # x_ref / o_ref: (rows, lanes) tile; a_ref: (rows, 1) per-row alpha.
    x = x_ref[...].astype(jnp.float32)
    a = a_ref[...].astype(jnp.float32)          # broadcasts over the lane dim
    z = a * x
    # sigmoid(z) == 0.5 * (tanh(z/2) + 1): one transcendental, overflow-safe.
    sig = 0.5 * (jnp.tanh(0.5 * z) + 1.0)
    o_ref[...] = (x * sig).astype(o_ref.dtype)


def _tpu_generation():
    try:
        kind = jax.devices()[0].device_kind.lower()
    except Exception:
        kind = ""
    for g in (7, 6, 5, 4):
        if f"v{g}" in kind:
            return g
    return 6


def _tuning_for_chip():
    gen = _tpu_generation()
    if gen >= 7:
        # v7x: 3.2 TB/s HBM, 64 MiB VMEM/TC, 2 TensorCores.
        return dict(target_bytes=6 << 20, vmem_limit=48 << 20, num_cores=2)
    if gen == 6:
        # v6e: 1.4 TB/s HBM, 128 MiB VMEM, 1 TC.
        return dict(target_bytes=4 << 20, vmem_limit=32 << 20, num_cores=1)
    # v5e (and older): 16 MiB scoped-VMEM default -> explicit limit matters.
    return dict(target_bytes=2 << 20, vmem_limit=32 << 20, num_cores=1)


def _choose_tiles(nc, hw, itemsize, target_bytes, num_cores):
    """Pick (row_tile, lane_tile) so one x tile is ~target_bytes."""
    sub_min = max(8, 32 // itemsize)            # 8 for f32, 16 for bf16

    # Lane (last-dim) tile: full hw if even a minimal-row tile fits the
    # budget; otherwise a 128-multiple slice (cdiv grid masks the edge).
    max_lane = max(128, (target_bytes // (sub_min * itemsize)) // 128 * 128)
    lane_tile = hw if hw <= max_lane else max_lane
    lane_steps = pl.cdiv(hw, lane_tile)

    # Row (sublane) tile: multiple of sub_min, sized to ~target_bytes.
    rows = max(sub_min,
               (target_bytes // (lane_tile * itemsize)) // sub_min * sub_min)
    nc_up = ((nc + sub_min - 1) // sub_min) * sub_min
    rows = min(rows, nc_up)

    # Only on multi-TensorCore chips (v7x): keep >= 2 grid steps per core so
    # each core's pipeline double-buffers (DMA overlaps compute).
    if num_cores > 1:
        min_steps = 2 * num_cores
        while rows > sub_min and pl.cdiv(nc, rows) * lane_steps < min_steps:
            rows = max(sub_min, ((rows // 2) // sub_min) * sub_min)

    return rows, lane_tile


def custom_activation(x, alpha, *, donate_x=False):
    """x: (N, C, H, W); alpha: (1, C, 1, 1). Returns x * sigmoid(alpha * x)."""
    n, c, h, w = x.shape
    nc, hw = n * c, h * w

    cfg = _tuning_for_chip()
    itemsize = jnp.dtype(x.dtype).itemsize
    rows, lane_tile = _choose_tiles(
        nc, hw, itemsize, cfg["target_bytes"], cfg["num_cores"])
    grid = (pl.cdiv(nc, rows), pl.cdiv(hw, lane_tile))

    # Glue (no HBM pass over x beyond the kernel itself): flatten NCHW to 2-D,
    # one alpha scalar per (n, c) row.  Both reshapes are layout no-ops.
    x2 = x.reshape(nc, hw)
    a_row = jnp.broadcast_to(alpha.reshape(1, c), (n, c)).reshape(nc, 1)
    a_row = a_row.astype(x.dtype)

    out2 = pl.pallas_call(
        _swish_kernel,
        out_shape=jax.ShapeDtypeStruct((nc, hw), x.dtype),
        grid_spec=pltpu.PrefetchScalarGridSpec(
            num_scalar_prefetch=0,
            grid=grid,
            in_specs=[
                # Streaming x tile (~target_bytes per step).
                pl.BlockSpec((rows, lane_tile), lambda i, j: (i, j)),
                # Matching per-tile alpha column: tiny, prefetched per step.
                pl.BlockSpec((rows, 1), lambda i, j: (i, 0)),
            ],
            out_specs=pl.BlockSpec((rows, lane_tile), lambda i, j: (i, j)),
        ),
        compiler_params=pltpu.CompilerParams(
            dimension_semantics=("parallel", "parallel"),
            vmem_limit_bytes=cfg["vmem_limit"],
        ),
        # Optional: donate x's HBM buffer (same shape/dtype as the output).
        input_output_aliases=({0: 0} if donate_x else {}),
    )(x2, a_row)

    return out2.reshape(n, c, h, w)


if __name__ == "__main__":
    key = jax.random.PRNGKey(0)
    N, C, H, W = 2, 4, 16, 16

    x = jax.random.normal(key, (N, C, H, W), dtype=jnp.float32)
    # Matches nn.Parameter(torch.ones((1, C, 1, 1))).
    alpha = jnp.ones((1, C, 1, 1), dtype=jnp.float32)

    y = custom_activation(x, alpha)
    y = jax.block_until_ready(y)

    # Reference check in plain JAX.
    y_ref = x * jax.nn.sigmoid(alpha * x)
    assert y.shape == (N, C, H, W)
    assert jnp.allclose(y, y_ref, atol=1e-5, rtol=1e-5)

    print("KERNEL_OK")
</pallas_src>

<mosaic_0001>
module attributes {stable_mosaic.version = 11 : i64} {
  func.func @_swish_kernel(%arg0: i32, %arg1: i32, %arg2: memref<8x256xf32, #tpu.memory_space<vmem>>, %arg3: memref<8x1xf32, #tpu.memory_space<vmem>>, %arg4: memref<8x256xf32, #tpu.memory_space<vmem>>) attributes {dimension_semantics = [#tpu.dimension_semantics<parallel>, #tpu.dimension_semantics<parallel>], iteration_bounds = array<i64: 1, 1>, scalar_prefetch = 0 : i64, scratch_operands = 0 : i64, tpu.core_type = #tpu.core_type<tc>, window_params = [{transform_indices = @transform_0, window_bounds = array<i64: 8, 256>}, {transform_indices = @transform_1, window_bounds = array<i64: 8, 1>}, {transform_indices = @transform_2, window_bounds = array<i64: 8, 256>}]} {
    %c0 = arith.constant 0 : index
    %c0_0 = arith.constant 0 : index
    %0 = vector.load %arg2[%c0, %c0_0] : memref<8x256xf32, #tpu.memory_space<vmem>>, vector<8x256xf32>
    %c0_1 = arith.constant 0 : index
    %c0_2 = arith.constant 0 : index
    %1 = vector.load %arg3[%c0_1, %c0_2] : memref<8x1xf32, #tpu.memory_space<vmem>>, vector<8x1xf32>
    %2 = vector.broadcast %1 : vector<8x1xf32> to vector<8x256xf32>
    %3 = arith.mulf %2, %0 : vector<8x256xf32>
    %cst = arith.constant 5.000000e-01 : f32
    %4 = vector.broadcast %cst : f32 to vector<8x256xf32>
    %5 = arith.mulf %4, %3 : vector<8x256xf32>
    %6 = math.tanh %5 : vector<8x256xf32>
    %cst_3 = arith.constant 1.000000e+00 : f32
    %7 = vector.broadcast %cst_3 : f32 to vector<8x256xf32>
    %8 = arith.addf %6, %7 : vector<8x256xf32>
    %cst_4 = arith.constant 5.000000e-01 : f32
    %9 = vector.broadcast %cst_4 : f32 to vector<8x256xf32>
    %10 = arith.mulf %9, %8 : vector<8x256xf32>
    %11 = arith.mulf %0, %10 : vector<8x256xf32>
    %c0_5 = arith.constant 0 : index
    %c0_6 = arith.constant 0 : index
    %12 = vector.load %arg4[%c0_5, %c0_6] : memref<8x256xf32, #tpu.memory_space<vmem>>, vector<8x256xf32>
    tpu.vector_store %arg4[%c0_5, %c0_6], %11 {strides = array<i32>} : memref<8x256xf32, #tpu.memory_space<vmem>>, vector<8x256xf32>,
    return
  }
  func.func @transform_0(%arg0: i32, %arg1: i32) -> (i32, i32) {
    %c0_i32 = arith.constant 0 : i32
    return %arg0, %arg1 : i32, i32
  }
  func.func @transform_1(%arg0: i32, %arg1: i32) -> (i32, i32) {
    %c0_i32 = arith.constant 0 : i32
    %c0_i32_0 = arith.constant 0 : i32
    return %arg0, %c0_i32 : i32, i32
  }
  func.func @transform_2(%arg0: i32, %arg1: i32) -> (i32, i32) {
    %c0_i32 = arith.constant 0 : i32
    return %arg0, %arg1 : i32, i32
  }
}

</mosaic_0001>

<llo_original>
// kernel: tpu_custom_call.1
$region0: #{tpu_custom_call.1}
  #allocation0 [shape = 'u32[]', space=smem, size = 0x4, offset = 0x4, fixed_abs, tag = 'smem constant byte address 0x4 - core index']
  #allocation1 [shape = 'u32[144,128]{1,0:T(1,128)}', space=vmem, size = 0x12000, scoped, tag = 'internal scratch']
  %s0 = inlined_call_operand.hbm [shape: f32[8,256], index: 0, kind: input, shape index: {}]
  %s1 = inlined_call_operand.vmem [shape: f32[8,1], index: 1, kind: input, shape index: {}]
  %s2 = inlined_call_operand.hbm [shape: f32[8,256], index: 2, kind: output, shape index: {}]
  %s3 = sld [smem:[#allocation0]]
  $region22: #{tpu_custom_call.1} parent=0
    _
  %s5 = ssub.s32 1, %s3
  %s6 = scalar_select 0, %s5, %s3
  $region1: #{tpu_custom_call.1} parent=0
    #allocation2 [shape = 'u8[8192]{0}', space=vmem, size = 0x2000, scoped, tag = 'input window, operand 0, single buffered']
    #allocation3 [shape = 's32[1]{0}', space=sflag, size = 0x4, scoped, tag = 'scoped memory for tpu_custom_call.1']
    #allocation4 [shape = 's32[1]{0}', space=sflag, size = 0x4, scoped, tag = 'scoped memory for tpu_custom_call.1']
    #allocation5 [shape = 'u8[8192]{0}', space=vmem, size = 0x2000, scoped, tag = 'output window, operand 0, single buffered']
    %7 = vsyncpa [#allocation3], 0
    %8 = vsyncpa [#allocation4], 0
    // Predicated region
    $region2: #{tpu_custom_call.1} parent=1 // pred_check
      _
    $region3: #{tpu_custom_call.1} parent=1 // pred_check_branch
      %10 = sbr.rel (0) target = $region5
    $region4: #{tpu_custom_call.1} parent=1 // pred_region
      %s12 = ssub.s32 256, 256
      %13 = vsyncadd [#allocation3], %s12
      %s15 = sshll.u32 [#allocation2], 4
      %s16 = int_to_ptr.vmem [resolvable:$true] %s15
      %18 = dma.hbm_to_vmem [thread:$0]  %s0, 256, %s16, [#allocation3]
    $region5: #{tpu_custom_call.1} parent=1 // pred_fallthru
      _
    // Predicated region
    $region6: #{tpu_custom_call.1} parent=1 // pred_check
      _
    $region7: #{tpu_custom_call.1} parent=1 // pred_check_branch
      %20 = sbr.rel (0) target = $region9
    $region8: #{tpu_custom_call.1} parent=1 // pred_region
      _
    $region9: #{tpu_custom_call.1} parent=1 // pred_fallthru
      _
    // Predicated region
    $region10: #{tpu_custom_call.1} parent=1 // pred_check
      _
    $region11: #{tpu_custom_call.1} parent=1 // pred_check_branch
      %22 = sbr.rel (0) target = $region13
    $region12: #{tpu_custom_call.1} parent=1 // pred_region
      %23 = dma.done [#allocation3], 256
    $region13: #{tpu_custom_call.1} parent=1 // pred_fallthru
      _
    %v24 = vld [vmem:[#allocation2] sm:$0xff]
    %v25 = vld [vmem:[#allocation2 + $0x8] sm:$0xff]
    %v26 = vld [vmem:[%s1] sm:$0xff]
    %28 = vset.pattern.permute.xlu0 0
    %29 = vperm.xlu0 %28, %v26
    %v30 = vpop.permute.xlu0 %29
    %v32 = vmul.f32 %v30, %v24
    %v33 = vmul.f32 %v30, %v25
    %v34 = vmul.f32 %v32, 0.5
    %v35 = vmul.f32 %v33, 0.5
    %v36 = vtanh.pop %v34
    %v37 = vtanh.pop %v35
    %v38 = vadd.f32 %v36, 1.0
    %v39 = vadd.f32 %v37, 1.0
    %v40 = vmul.f32 %v38, 0.5
    %v41 = vmul.f32 %v39, 0.5
    %v42 = vmul.f32 %v24, %v40
    %v43 = vmul.f32 %v25, %v41
    %44 = vst [vmem:[#allocation5] sm:$0xff] %v42
    %45 = vst [vmem:[#allocation5 + $0x8] sm:$0xff] %v43
    // Predicated region
    $region14: #{tpu_custom_call.1} parent=1 // pred_check
      _
    $region15: #{tpu_custom_call.1} parent=1 // pred_check_branch
      %47 = sbr.rel (0) target = $region17
    $region16: #{tpu_custom_call.1} parent=1 // pred_region
      %s49 = ssub.s32 256, 256
      %50 = vsyncadd [#allocation4], %s49
      %s52 = sshll.u32 [#allocation5], 4
      %s53 = int_to_ptr.vmem [resolvable:$true] %s52
      %55 = dma.vmem_to_hbm [thread:$0]  %s53, 256, %s2, [#allocation4]
    $region17: #{tpu_custom_call.1} parent=1 // pred_fallthru
      _
    // Predicated region
    $region18: #{tpu_custom_call.1} parent=1 // pred_check
      _
    $region19: #{tpu_custom_call.1} parent=1 // pred_check_branch
      %57 = sbr.rel (0) target = $region21
    $region20: #{tpu_custom_call.1} parent=1 // pred_region
      %58 = dma.done [#allocation4], 256
    $region21: #{tpu_custom_call.1} parent=1 // pred_fallthru
      _
    %59 = vsyncpa [#allocation3], 1
    %60 = vsyncpa [#allocation4], 1

</llo_original>
